<compile_context>
chip_gen: v7x
topology: tpu7x:2x2x1
jax: 0.10.0
libtpu: 0.0.40
codegen_flags: <defaults>
</compile_context>

<pallas_src>
import functools

import jax
import jax.numpy as jnp
from jax import lax
from jax.experimental import pallas as pl
from jax.experimental.pallas import tpu as pltpu


def _round_up(x: int, m: int) -> int:
    return ((x + m - 1) // m) * m


def _center_loss_kernel(x_ref, ct_ref, x2_ref, c2_ref, labels_ref, out_ref,
                        acc_ref, *, c_tile):
    """Grid = (B-tiles ["parallel"], C-tiles ["arbitrary", reduction last])."""
    k = pl.program_id(1)
    nc = pl.num_programs(1)

    @pl.when(k == 0)
    def _init():
        acc_ref[...] = jnp.zeros_like(acc_ref)

    x = x_ref[...]            # (b_tile, D)   native dtype
    ct = ct_ref[...]          # (D, c_tile)   native dtype (centers, transposed)
    labels = labels_ref[...]  # (b_tile, 1)   int32, padded rows are -1

    b_tile = x.shape[0]
    del b_tile  # shape is implicit below

    # MXU: x @ centers^T with f32 accumulation (operands stay in native dtype).
    xc = jnp.dot(x, ct, preferred_element_type=jnp.float32)        # (b_tile, c_tile)

    # distmat = ||x||^2 + ||c||^2 - 2 x.c   (matches torch addmm_(1, -2, ...))
    # Norms come in pre-computed (hoisted out of the grid loop).
    distmat = x2_ref[...] + c2_ref[...] - 2.0 * xc                  # f32

    # One-hot of labels for this C tile via a (1, c_tile) iota row broadcast.
    classes = lax.broadcasted_iota(jnp.int32, (1, c_tile), 1) + k * c_tile
    match = labels == classes                                       # (b_tile, c_tile)

    # matched -> clip(dist, 1e-12, 1e12); everything else -> 0.
    # (The 1e-12 floor of unmatched *real* classes is added analytically in the
    #  wrapper; padded rows/columns never match, so they contribute exactly 0.)
    contrib = jnp.where(match, jnp.clip(distmat, 1e-12, 1e12), 0.0)

    # Lane-dense accumulation: fold c_tile lanes down to 128 with VPU adds over
    # static, 128-aligned lane slices (no cross-lane work inside the loop).
    n_lane_groups = c_tile // 128
    folded = contrib[:, :128]
    for j in range(1, n_lane_groups):
        folded = folded + contrib[:, j * 128:(j + 1) * 128]
    acc_ref[...] += folded                                          # (b_tile, 128)

    # Final 128 -> 1 cross-lane reduce + 1-lane store only once per B tile.
    @pl.when(k == nc - 1)
    def _finalize():
        out_ref[...] = jnp.sum(acc_ref[...], axis=1, keepdims=True)


def center_loss(x, centers, labels, *, b_tile_max=1024, c_tile_max=1024):
    """x: (B, D) float, centers: (C, D) float, labels: (B,) int -> scalar f32 loss."""
    B, D = x.shape
    C, Dc = centers.shape
    assert D == Dc, (D, Dc)

    itemsize = jnp.dtype(x.dtype).itemsize

    # Tile sizes: C tile lane-dense (multiple of 128); B tile multiple of 8.
    c_tile = min(c_tile_max, _round_up(C, 128))
    c_tile = max(128, (c_tile // 128) * 128)
    b_tile = min(b_tile_max, _round_up(B, 8))
    b_tile = max(8, (b_tile // 8) * 8)

    # Generation-aware VMEM budget (v7x: 64 MiB, v5e/v6e: 128 MiB).
    try:
        vmem_cap = int(pltpu.get_tpu_info().vmem_capacity_bytes)
    except Exception:  # pragma: no cover - conservative fallback
        vmem_cap = 64 * 1024 * 1024
    budget = int(0.7 * vmem_cap)

    def vmem_estimate(bt, ct):
        # double-buffered streamed inputs + f32 temporaries + scratch + output
        stream = 2 * ((bt * D + D * ct) * itemsize + (bt + ct + 2 * bt) * 4)
        temps = 4 * bt * ct * 4
        scratch = bt * 128 * 4 + 2 * bt * 4
        return stream + temps + scratch

    while vmem_estimate(b_tile, c_tile) > budget and (c_tile > 128 or b_tile > 8):
        if c_tile > 128:
            c_tile = max(128, ((c_tile // 2) // 128) * 128)
        else:
            b_tile = max(8, ((b_tile // 2) // 8) * 8)

    Cp = _round_up(C, c_tile)
    Bp = _round_up(B, b_tile)
    nb = Bp // b_tile
    nc = Cp // c_tile

    labels2d = labels.astype(jnp.int32).reshape(B, 1)
    xp = x
    if Bp != B:
        xp = jnp.pad(x, ((0, Bp - B), (0, 0)))
        labels2d = jnp.pad(labels2d, ((0, Bp - B), (0, 0)), constant_values=-1)

    centers_t = centers.T                                           # (D, C)
    if Cp != C:
        centers_t = jnp.pad(centers_t, ((0, 0), (0, Cp - C)))

    # Hoisted squared norms (computed once by XLA, not per grid step).
    xf = xp.astype(jnp.float32)
    ctf = centers_t.astype(jnp.float32)
    x2 = jnp.sum(xf * xf, axis=1, keepdims=True)                    # (Bp, 1)
    c2 = jnp.sum(ctf * ctf, axis=0, keepdims=True)                  # (1, Cp)

    kernel = functools.partial(_center_loss_kernel, c_tile=c_tile)

    est = vmem_estimate(b_tile, c_tile)
    vmem_limit = min(int(0.9 * vmem_cap), max(32 * 1024 * 1024, 2 * est))

    bytes_accessed = (
        xp.size * itemsize
        + centers_t.size * itemsize * nb      # centers re-read once per B tile
        + x2.size * 4 + c2.size * 4 * nb
        + labels2d.size * 4
        + Bp * 4
    )

    partials = pl.pallas_call(
        kernel,
        out_shape=jax.ShapeDtypeStruct((Bp, 1), jnp.float32),
        grid_spec=pltpu.PrefetchScalarGridSpec(
            num_scalar_prefetch=0,
            grid=(nb, nc),
            in_specs=[
                pl.BlockSpec((b_tile, D), lambda i, k: (i, 0)),     # x
                pl.BlockSpec((D, c_tile), lambda i, k: (0, k)),     # centers^T
                pl.BlockSpec((b_tile, 1), lambda i, k: (i, 0)),     # ||x||^2
                pl.BlockSpec((1, c_tile), lambda i, k: (0, k)),     # ||c||^2
                pl.BlockSpec((b_tile, 1), lambda i, k: (i, 0)),     # labels
            ],
            out_specs=pl.BlockSpec((b_tile, 1), lambda i, k: (i, 0)),
            scratch_shapes=[pltpu.VMEM((b_tile, 128), jnp.float32)],
        ),
        compiler_params=pltpu.CompilerParams(
            dimension_semantics=("parallel", "arbitrary"),
            vmem_limit_bytes=int(vmem_limit),
        ),
        cost_estimate=pl.CostEstimate(
            flops=2 * Bp * Cp * D + 4 * Bp * Cp,
            transcendentals=0,
            bytes_accessed=int(bytes_accessed),
        ),
    )(xp, centers_t, x2, c2, labels2d)

    # Padded rows hold exact zeros.  Each real row's (C-1) unmatched classes
    # contribute the post-mask clamp floor 1e-12 (added analytically, matching
    # torch's `dist.clamp(min=1e-12, ...)` after `distmat * mask`).
    floor_sum = jnp.float32(B) * jnp.float32(C - 1) * jnp.float32(1e-12)
    return (jnp.sum(partials) + floor_sum) / jnp.float32(B)


def center_loss_ref(x, centers, labels):
    """Pure-JAX reference mirroring the PyTorch forward exactly."""
    B = x.shape[0]
    C = centers.shape[0]
    distmat = (
        jnp.sum(x ** 2, axis=1, keepdims=True)
        + jnp.sum(centers ** 2, axis=1)[None, :]
        - 2.0 * x @ centers.T
    )
    mask = (labels[:, None] == jnp.arange(C)[None, :]).astype(jnp.float32)
    dist = jnp.clip(distmat * mask, 1e-12, 1e12)
    return jnp.sum(dist) / B


if __name__ == "__main__":
    key = jax.random.PRNGKey(0)
    k_x, k_c, k_l, k_x2, k_c2, k_l2 = jax.random.split(key, 6)

    # Case 1: small shapes matching the module defaults (single grid step).
    num_classes, feat_dim, batch = 10, 8, 16
    centers = jax.random.normal(k_c, (num_classes, feat_dim), dtype=jnp.float32)
    x = jax.random.normal(k_x, (batch, feat_dim), dtype=jnp.float32)
    labels = jax.random.randint(k_l, (batch,), 0, num_classes, dtype=jnp.int32)

    loss = center_loss(x, centers, labels)
    jax.block_until_ready(loss)
    ref = center_loss_ref(x, centers, labels)
    assert jnp.allclose(loss, ref, rtol=1e-5, atol=1e-5), (loss, ref)

    # Case 2: exercises multi-tile grid (nb=3, nc=2) plus B- and C-padding.
    C2, D2, B2 = 700, 16, 40
    centers2 = jax.random.normal(k_c2, (C2, D2), dtype=jnp.float32)
    x2 = jax.random.normal(k_x2, (B2, D2), dtype=jnp.float32)
    labels2 = jax.random.randint(k_l2, (B2,), 0, C2, dtype=jnp.int32)

    loss2 = center_loss(x2, centers2, labels2, b_tile_max=16, c_tile_max=512)
    jax.block_until_ready(loss2)
    ref2 = center_loss_ref(x2, centers2, labels2)
    assert jnp.allclose(loss2, ref2, rtol=1e-5, atol=1e-5), (loss2, ref2)

    print("KERNEL_OK")
</pallas_src>

<mosaic_0001>
module attributes {stable_mosaic.version = 11 : i64} {
  func.func @_center_loss_kernel(%arg0: i32, %arg1: i32, %arg2: memref<16x8xf32, #tpu.memory_space<vmem>>, %arg3: memref<8x128xf32, #tpu.memory_space<vmem>>, %arg4: memref<16x1xf32, #tpu.memory_space<vmem>>, %arg5: memref<1x128xf32, #tpu.memory_space<vmem>>, %arg6: memref<16x1xi32, #tpu.memory_space<vmem>>, %arg7: memref<16x1xf32, #tpu.memory_space<vmem>>, %arg8: memref<16x128xf32, #tpu.memory_space<vmem>>) attributes {dimension_semantics = [#tpu.dimension_semantics<parallel>, #tpu.dimension_semantics<arbitrary>], iteration_bounds = array<i64: 1, 1>, scalar_prefetch = 0 : i64, scratch_operands = 1 : i64, tpu.core_type = #tpu.core_type<tc>, window_params = [{transform_indices = @transform_0, window_bounds = array<i64: 16, 8>}, {transform_indices = @transform_1, window_bounds = array<i64: 8, 128>}, {transform_indices = @transform_2, window_bounds = array<i64: 16, 1>}, {transform_indices = @transform_3, window_bounds = array<i64: 1, 128>}, {transform_indices = @transform_4, window_bounds = array<i64: 16, 1>}, {transform_indices = @transform_5, window_bounds = array<i64: 16, 1>}]} {
    %c0_i32 = arith.constant 0 : i32
    %0 = arith.cmpi eq, %arg1, %c0_i32 : i32
    %1 = arith.extui %0 : i1 to i32
    %c0_i32_0 = arith.constant 0 : i32
    %2 = arith.cmpi ne, %1, %c0_i32_0 : i32
    scf.if %2 {
      %cst_20 = arith.constant 0.000000e+00 : f32
      %34 = vector.broadcast %cst_20 : f32 to vector<16x128xf32>
      %c0_21 = arith.constant 0 : index
      %c0_22 = arith.constant 0 : index
      %35 = vector.load %arg8[%c0_21, %c0_22] : memref<16x128xf32, #tpu.memory_space<vmem>>, vector<16x128xf32>
      tpu.vector_store %arg8[%c0_21, %c0_22], %34 {strides = array<i32>} : memref<16x128xf32, #tpu.memory_space<vmem>>, vector<16x128xf32>,
    } else {
    }
    %c0 = arith.constant 0 : index
    %c0_1 = arith.constant 0 : index
    %3 = vector.load %arg2[%c0, %c0_1] : memref<16x8xf32, #tpu.memory_space<vmem>>, vector<16x8xf32>
    %c0_2 = arith.constant 0 : index
    %c0_3 = arith.constant 0 : index
    %4 = vector.load %arg3[%c0_2, %c0_3] : memref<8x128xf32, #tpu.memory_space<vmem>>, vector<8x128xf32>
    %c0_4 = arith.constant 0 : index
    %c0_5 = arith.constant 0 : index
    %5 = vector.load %arg6[%c0_4, %c0_5] : memref<16x1xi32, #tpu.memory_space<vmem>>, vector<16x1xi32>
    %cst = arith.constant dense<0.000000e+00> : vector<16x128xf32>
    %6 = tpu.matmul %3, %4, %cst {dimension_numbers = #tpu.dot_dimension_numbers<[1], [0], [0], [1], [0, 0, 1, 1], [], []>} : vector<16x8xf32>, vector<8x128xf32>, vector<16x128xf32> -> vector<16x128xf32>
    %c0_6 = arith.constant 0 : index
    %c0_7 = arith.constant 0 : index
    %7 = vector.load %arg4[%c0_6, %c0_7] : memref<16x1xf32, #tpu.memory_space<vmem>>, vector<16x1xf32>
    %c0_8 = arith.constant 0 : index
    %c0_9 = arith.constant 0 : index
    %8 = vector.load %arg5[%c0_8, %c0_9] : memref<1x128xf32, #tpu.memory_space<vmem>>, vector<1x128xf32>
    %9 = vector.broadcast %7 : vector<16x1xf32> to vector<16x128xf32>
    %10 = vector.broadcast %8 : vector<1x128xf32> to vector<16x128xf32>
    %11 = arith.addf %9, %10 : vector<16x128xf32>
    %cst_10 = arith.constant 2.000000e+00 : f32
    %12 = vector.broadcast %cst_10 : f32 to vector<16x128xf32>
    %13 = arith.mulf %12, %6 : vector<16x128xf32>
    %14 = arith.subf %11, %13 : vector<16x128xf32>
    %15 = tpu.iota {dimensions = array<i32: 1>} : vector<1x128xi32>
    %c128_i32 = arith.constant 128 : i32
    %16 = arith.muli %arg1, %c128_i32 : i32
    %17 = vector.broadcast %16 : i32 to vector<1x128xi32>
    %18 = arith.addi %15, %17 : vector<1x128xi32>
    %19 = vector.broadcast %5 : vector<16x1xi32> to vector<16x128xi32>
    %20 = vector.broadcast %18 : vector<1x128xi32> to vector<16x128xi32>
    %21 = arith.cmpi eq, %19, %20 : vector<16x128xi32>
    %cst_11 = arith.constant 9.99999996E-13 : f32
    %cst_12 = arith.constant 9.99999995E+11 : f32
    %22 = vector.broadcast %cst_11 : f32 to vector<16x128xf32>
    %23 = arith.maximumf %22, %14 : vector<16x128xf32>
    %24 = vector.broadcast %cst_12 : f32 to vector<16x128xf32>
    %25 = arith.minimumf %24, %23 : vector<16x128xf32>
    %cst_13 = arith.constant 0.000000e+00 : f32
    %26 = vector.broadcast %cst_13 : f32 to vector<16x128xf32>
    %27 = arith.select %21, %25, %26 : vector<16x128xi1>, vector<16x128xf32>
    %c0_14 = arith.constant 0 : index
    %c0_15 = arith.constant 0 : index
    %28 = vector.load %arg8[%c0_14, %c0_15] : memref<16x128xf32, #tpu.memory_space<vmem>>, vector<16x128xf32>
    %29 = arith.addf %28, %27 : vector<16x128xf32>
    %c0_16 = arith.constant 0 : index
    %c0_17 = arith.constant 0 : index
    %30 = vector.load %arg8[%c0_16, %c0_17] : memref<16x128xf32, #tpu.memory_space<vmem>>, vector<16x128xf32>
    tpu.vector_store %arg8[%c0_16, %c0_17], %29 {strides = array<i32>} : memref<16x128xf32, #tpu.memory_space<vmem>>, vector<16x128xf32>,
    %c0_i32_18 = arith.constant 0 : i32
    %31 = arith.cmpi eq, %arg1, %c0_i32_18 : i32
    %32 = arith.extui %31 : i1 to i32
    %c0_i32_19 = arith.constant 0 : i32
    %33 = arith.cmpi ne, %32, %c0_i32_19 : i32
    scf.if %33 {
      %c0_20 = arith.constant 0 : index
      %c0_21 = arith.constant 0 : index
      %34 = vector.load %arg8[%c0_20, %c0_21] : memref<16x128xf32, #tpu.memory_space<vmem>>, vector<16x128xf32>
      %cst_22 = arith.constant dense<0.000000e+00> : vector<16xf32>
      %35 = vector.multi_reduction <add>, %34, %cst_22 [1] : vector<16x128xf32> to vector<16xf32>
      %36 = vector.shape_cast %35 : vector<16xf32> to vector<16x1xf32>
      %c0_23 = arith.constant 0 : index
      %c0_24 = arith.constant 0 : index
      %37 = vector.load %arg7[%c0_23, %c0_24] : memref<16x1xf32, #tpu.memory_space<vmem>>, vector<16x1xf32>
      tpu.vector_store %arg7[%c0_23, %c0_24], %36 {strides = array<i32>} : memref<16x1xf32, #tpu.memory_space<vmem>>, vector<16x1xf32>,
    } else {
    }
    return
  }
  func.func @transform_0(%arg0: i32, %arg1: i32) -> (i32, i32) {
    %c0_i32 = arith.constant 0 : i32
    %c0_i32_0 = arith.constant 0 : i32
    return %arg0, %c0_i32 : i32, i32
  }
  func.func @transform_1(%arg0: i32, %arg1: i32) -> (i32, i32) {
    %c0_i32 = arith.constant 0 : i32
    %c0_i32_0 = arith.constant 0 : i32
    return %c0_i32, %arg1 : i32, i32
  }
  func.func @transform_2(%arg0: i32, %arg1: i32) -> (i32, i32) {
    %c0_i32 = arith.constant 0 : i32
    %c0_i32_0 = arith.constant 0 : i32
    return %arg0, %c0_i32 : i32, i32
  }
  func.func @transform_3(%arg0: i32, %arg1: i32) -> (i32, i32) {
    %c0_i32 = arith.constant 0 : i32
    %c0_i32_0 = arith.constant 0 : i32
    return %c0_i32, %arg1 : i32, i32
  }
  func.func @transform_4(%arg0: i32, %arg1: i32) -> (i32, i32) {
    %c0_i32 = arith.constant 0 : i32
    %c0_i32_0 = arith.constant 0 : i32
    return %arg0, %c0_i32 : i32, i32
  }
  func.func @transform_5(%arg0: i32, %arg1: i32) -> (i32, i32) {
    %c0_i32 = arith.constant 0 : i32
    %c0_i32_0 = arith.constant 0 : i32
    return %arg0, %c0_i32 : i32, i32
  }
}

</mosaic_0001>

<llo_original>
// kernel: tpu_custom_call.1
$region0: #{tpu_custom_call.1}
  #allocation0 [shape = 'u32[]', space=smem, size = 0x4, offset = 0x4, fixed_abs, tag = 'smem constant byte address 0x4 - core index']
  #allocation1 [shape = 'u32[144,128]{1,0:T(1,128)}', space=vmem, size = 0x12000, scoped, tag = 'internal scratch']
  #allocation2 [shape = 'f32[16,128]{1,0:T(8,128)}', space=vmem, size = 0x2000, scoped, tag = 'scratch operand']
  %s0 = inlined_call_operand.vmem [shape: f32[16,8], index: 0, kind: input, shape index: {}]
  %s1 = inlined_call_operand.vmem [shape: f32[8,128], index: 1, kind: input, shape index: {}]
  %s2 = inlined_call_operand.vmem [shape: f32[16,1], index: 2, kind: input, shape index: {}]
  %s3 = inlined_call_operand.vmem [shape: f32[1,128], index: 3, kind: input, shape index: {}]
  %s4 = inlined_call_operand.vmem [shape: s32[16,1], index: 4, kind: input, shape index: {}]
  %s5 = inlined_call_operand.vmem [shape: f32[16,1], index: 5, kind: output, shape index: {}]
  %s6 = sld [smem:[#allocation0]]
  $region38: #{tpu_custom_call.1} parent=0
    _
  %s8 = ssub.s32 1, %s6
  %s9 = scalar_select 0, %s8, %s6
  // Predicated region
  $region2: #{tpu_custom_call.1} parent=0 // pred_check
    _
  $region3: #{tpu_custom_call.1} parent=0 // pred_check_branch
    %11 = sbr.rel (0) target = $region5
  $region4: #{tpu_custom_call.1} parent=0 // pred_region
    _
  $region5: #{tpu_custom_call.1} parent=0 // pred_fallthru
    _
  // Predicated region
  $region6: #{tpu_custom_call.1} parent=0 // pred_check
    _
  $region7: #{tpu_custom_call.1} parent=0 // pred_check_branch
    %13 = sbr.rel (0) target = $region9
  $region8: #{tpu_custom_call.1} parent=0 // pred_region
    _
  $region9: #{tpu_custom_call.1} parent=0 // pred_fallthru
    _
  // Predicated region
  $region10: #{tpu_custom_call.1} parent=0 // pred_check
    _
  $region11: #{tpu_custom_call.1} parent=0 // pred_check_branch
    %15 = sbr.rel (0) target = $region13
  $region12: #{tpu_custom_call.1} parent=0 // pred_region
    _
  $region13: #{tpu_custom_call.1} parent=0 // pred_fallthru
    _
  // Predicated region
  $region14: #{tpu_custom_call.1} parent=0 // pred_check
    _
  $region15: #{tpu_custom_call.1} parent=0 // pred_check_branch
    %17 = sbr.rel (0) target = $region17
  $region16: #{tpu_custom_call.1} parent=0 // pred_region
    _
  $region17: #{tpu_custom_call.1} parent=0 // pred_fallthru
    _
  // Predicated region
  $region18: #{tpu_custom_call.1} parent=0 // pred_check
    _
  $region19: #{tpu_custom_call.1} parent=0 // pred_check_branch
    %19 = sbr.rel (0) target = $region21
  $region20: #{tpu_custom_call.1} parent=0 // pred_region
    _
  $region21: #{tpu_custom_call.1} parent=0 // pred_fallthru
    _
  %p20 = scmp.eq.s32.totalorder 0, 0
  // Predicated region
  $region22: #{tpu_custom_call.1} parent=0 // pred_check
    %p21 = pneg %p20
  $region23: #{tpu_custom_call.1} parent=0 // pred_check_branch
    %23 = sbr.rel (%p21) target = $region25
  $region24: #{tpu_custom_call.1} parent=0 // pred_region
    %24 = vst [vmem:[#allocation2] sm:$0xff] 0.0
    %25 = vst [vmem:[#allocation2 + $0x8] sm:$0xff] 0.0
  $region25: #{tpu_custom_call.1} parent=0 // pred_fallthru
    _
  %v26 = vld [vmem:[%s0] sm:$0xff]
  %v27 = vld [vmem:[%s0 + $0x8] sm:$0xff]
  %v28 = vld [vmem:[%s1] sm:$0xff]
  %v29 = vld [vmem:[%s4] sm:$0xff]
  %v30 = vld [vmem:[%s4 + $0x8] sm:$0xff]
  %vm31 = vcmask 64512
  %v33 = vsel %vm31, %v26, 0
  %v36 = vsel %vm31, %v27, 0
  %38 = vmatprep.subr.mxu0 0.0
  %39 = vmatpush1.msra.mxu0 %v28
  %40 = vmatprep.subr.mxu0 0.0
  %41 = vmatpush1.msra.mxu0 0.0
  %42 = vmatprep.subr.mxu0 0.0
  %43 = vmatpush1.msra.mxu0 0.0
  %44 = vmatprep.subr.mxu0 0.0
  %45 = vmatpush1.msra.mxu0 0.0
  %46 = vmatprep.subr.mxu0 0.0
  %47 = vmatpush1.msra.mxu0 0.0
  %48 = vmatprep.subr.mxu0 0.0
  %49 = vmatpush1.msra.mxu0 0.0
  %50 = vmatprep.subr.mxu0 0.0
  %51 = vmatpush1.msra.mxu0 0.0
  %52 = vmatprep.subr.mxu0 0.0
  %53 = vmatpush1.msra.mxu0 0.0
  %54 = vmatprep.subr.mxu0 0.0
  %55 = vmatpush1.msra.mxu0 0.0
  %56 = vmatprep.subr.mxu0 0.0
  %57 = vmatpush1.msra.mxu0 0.0
  %58 = vmatprep.subr.mxu0 0.0
  %59 = vmatpush1.msra.mxu0 0.0
  %60 = vmatprep.subr.mxu0 0.0
  %61 = vmatpush1.msra.mxu0 0.0
  %62 = vmatprep.subr.mxu0 0.0
  %63 = vmatpush1.msra.mxu0 0.0
  %64 = vmatprep.subr.mxu0 0.0
  %65 = vmatpush1.msra.mxu0 0.0
  %66 = vmatprep.subr.mxu0 0.0
  %67 = vmatpush1.msra.mxu0 0.0
  %68 = vmatprep.subr.mxu0 0.0
  %69 = vmatpush1.msra.mxu0 0.0
  %70 = vmatprep.subr.mxu0 0.0
  %71 = vmatpush1.msra.mxu0 0.0
  %72 = vmatprep.subr.mxu0 0.0
  %73 = vmatpush1.msra.mxu0 0.0
  %74 = vmatprep.subr.mxu0 0.0
  %75 = vmatpush1.msra.mxu0 0.0
  %76 = vmatprep.subr.mxu0 0.0
  %77 = vmatpush1.msra.mxu0 0.0
  %78 = vmatprep.subr.mxu0 0.0
  %79 = vmatpush1.msra.mxu0 0.0
  %80 = vmatprep.subr.mxu0 0.0
  %81 = vmatpush1.msra.mxu0 0.0
  %82 = vmatprep.subr.mxu0 0.0
  %83 = vmatpush1.msra.mxu0 0.0
  %84 = vmatprep.subr.mxu0 0.0
  %85 = vmatpush1.msra.mxu0 0.0
  %86 = vmatprep.subr.mxu0 0.0
  %87 = vmatpush1.msra.mxu0 0.0
  %88 = vmatprep.subr.mxu0 0.0
  %89 = vmatpush1.msra.mxu0 0.0
  %90 = vmatprep.subr.mxu0 0.0
  %91 = vmatpush1.msra.mxu0 0.0
  %92 = vmatprep.subr.mxu0 0.0
  %93 = vmatpush1.msra.mxu0 0.0
  %94 = vmatprep.subr.mxu0 0.0
  %95 = vmatpush1.msra.mxu0 0.0
  %96 = vmatprep.subr.mxu0 0.0
  %97 = vmatpush1.msra.mxu0 0.0
  %98 = vmatprep.subr.mxu0 0.0
  %99 = vmatpush1.msra.mxu0 0.0
  %100 = vmatprep.subr.mxu0 0.0
  %101 = vmatpush1.msra.mxu0 0.0
  %102 = vmatprep.mubr.f32.mxu0 0.0
  %103 = vmatmul.mubr.f32.gmra.mrb[0].mxu0 %v33
  %v104 = vpop.f32.mrb[0].mxu0
  %v105 = vadd.f32 0.0, %v104
  %v106 = vpop.f32.mrb[0].mxu0
  %107 = vmatprep.mubr.f32.mxu0 0.0
  %108 = vmatmul.mubr.f32.gmra.mrb[0].mxu0 %v36
  %v109 = vpop.f32.mrb[0].mxu0
  %v110 = vadd.f32 0.0, %v109
  %v111 = vpop.f32.mrb[0].mxu0
  %112 = vdwg.mxu0
  %v113 = vld [vmem:[%s2] sm:$0xff]
  %v114 = vld [vmem:[%s2 + $0x8] sm:$0xff]
  %v115 = vld [vmem:[%s3] sm:$0x1]
  %117 = vset.pattern.permute.xlu0 0
  %118 = vperm.xlu0 %117, %v113
  %v119 = vpop.permute.xlu0 %118
  %122 = vset.pattern.permute.xlu0 0
  %123 = vperm.xlu0 %122, %v114
  %v124 = vpop.permute.xlu0 %123
  %v127 = vlaneseq
  %v128 = vshrl.u32 %v127, 7
  %v129 = vsub.s32 0, %v128
  %v130 = vrot.slane %v115, %v129
  %v132 = vadd.f32 %v119, %v130
  %v133 = vadd.f32 %v124, %v130
  %v134 = vmul.f32 %v105, 2.0
  %v135 = vmul.f32 %v110, 2.0
  %v136 = vsub.f32 %v132, %v134
  %v137 = vsub.f32 %v133, %v135
  %v138 = vlaneseq
  %v139 = vand.u32 %v138, 127
  %s140 = smul.u32 0, 128
  %v141 = vstv %s140
  %v142 = vadd.s32 %v139, %v141
  %143 = vset.pattern.permute.xlu0 0
  %144 = vperm.xlu0 %143, %v29
  %v145 = vpop.permute.xlu0 %144
  %146 = vset.pattern.permute.xlu0 0
  %147 = vperm.xlu0 %146, %v30
  %v148 = vpop.permute.xlu0 %147
  %vm149 = vcmp.eq.s32.totalorder %v145, %v142
  %vm150 = vcmp.eq.s32.totalorder %v148, %v142
  %v151 = vmax.f32 %v136, 1e-12
  %v152 = vmax.f32 %v137, 1e-12
  %v153 = vmin.f32 %v151, 1e+12
  %v154 = vmin.f32 %v152, 1e+12
  %v155 = vsel %vm149, %v153, 0.0
  %v156 = vsel %vm150, %v154, 0.0
  %v157 = vld [vmem:[#allocation2] sm:$0xff]
  %v158 = vld [vmem:[#allocation2 + $0x8] sm:$0xff]
  %v159 = vadd.f32 %v157, %v155
  %v160 = vadd.f32 %v158, %v156
  %161 = vst [vmem:[#allocation2] sm:$0xff] %v159
  %162 = vst [vmem:[#allocation2 + $0x8] sm:$0xff] %v160
  // Predicated region
  $region26: #{tpu_custom_call.1} parent=0 // pred_check
    %p163 = pneg %p20
  $region27: #{tpu_custom_call.1} parent=0 // pred_check_branch
    %165 = sbr.rel (%p163) target = $region29
  $region28: #{tpu_custom_call.1} parent=0 // pred_region
    %v166 = vld [vmem:[#allocation2] sm:$0xff]
    %v167 = vld [vmem:[#allocation2 + $0x8] sm:$0xff]
    %168 = vadd.xlane.f32.xlu0 %v166
    %v169 = vpop.xlane.xlu0 %168
    %170 = vadd.xlane.f32.xlu0 %v167
    %v171 = vpop.xlane.xlu0 %170
    %vm172 = vcmask 7168
    %173 = vst.msk [vmem:[%s5] sm:$0xff] %vm172, %v169
    %174 = vst.msk [vmem:[%s5 + $0x8] sm:$0xff] %vm172, %v171
  $region29: #{tpu_custom_call.1} parent=0 // pred_fallthru
    _
  // Predicated region
  $region30: #{tpu_custom_call.1} parent=0 // pred_check
    _
  $region31: #{tpu_custom_call.1} parent=0 // pred_check_branch
    %176 = sbr.rel (0) target = $region33
  $region32: #{tpu_custom_call.1} parent=0 // pred_region
    _
  $region33: #{tpu_custom_call.1} parent=0 // pred_fallthru
    _
  // Predicated region
  $region34: #{tpu_custom_call.1} parent=0 // pred_check
    _
  $region35: #{tpu_custom_call.1} parent=0 // pred_check_branch
    %178 = sbr.rel (0) target = $region37
  $region36: #{tpu_custom_call.1} parent=0 // pred_region
    _
  $region37: #{tpu_custom_call.1} parent=0 // pred_fallthru
    _

</llo_original>
